<compile_context>
chip_gen: v7x
topology: tpu7x:2x2x1
jax: 0.10.0
libtpu: 0.0.40
codegen_flags: <defaults>
</compile_context>

<pallas_src>
import math

import jax
import jax.numpy as jnp
import numpy as np
from jax.experimental import pallas as pl
from jax.experimental.pallas import tpu as pltpu

EPS = 1e-5
# (start, stop) column ranges that get instance-normalized, mirroring
# no_size=3, pt_size=6, remaining_pt_size=11, ttd_slack_size=16.
SEGMENTS = ((0, 3), (3, 6), (6, 11), (11, 16))
PASS_START = 16  # columns >= 16 are passed through unchanged


def _state_processor_kernel(x_ref, mn_ref, mt_ref, pass_ref, o_ref):
    """One (TB, W) tile: mean/E[x^2] via MXU matmuls, then out = x*scale + bias."""
    x = x_ref[...].astype(jnp.float32)                                # (TB, W)
    mn = mn_ref[...]                                                  # (W, S): indicator / n
    mt = mt_ref[...]                                                  # (S, W): indicator
    # One-pass statistics on the MXU (mn already folds the 1/n factor).
    mean = jnp.dot(x, mn, preferred_element_type=jnp.float32)         # (TB, S)
    msq = jnp.dot(x * x, mn, preferred_element_type=jnp.float32)      # (TB, S)
    var = jnp.maximum(msq - mean * mean, 0.0)                         # clamp fp cancellation
    inv = jax.lax.rsqrt(var + EPS)                                    # EUP slot
    # Broadcast per-segment stats back to per-column scale/bias.
    # Pass-through columns: scale = 0 + pass_row(=1), bias = 0  ->  identity.
    scale = jnp.dot(inv, mt, preferred_element_type=jnp.float32) + pass_ref[...]
    bias = jnp.dot(-mean * inv, mt, preferred_element_type=jnp.float32)
    o_ref[...] = (x * scale + bias).astype(o_ref.dtype)


def _pick_pack(L):
    """Smallest p such that p*L is a multiple of 128 (fully lane-dense tiles)."""
    return min(128 // math.gcd(L, 128), 128)


def _build_constants(L, pack):
    """Block-diagonal indicator matrices for `pack` logical rows per super-row."""
    nseg = len(SEGMENTS)
    W, S = pack * L, pack * nseg
    m = np.zeros((W, S), np.float32)
    pass_row = np.zeros((1, W), np.float32)
    for r in range(pack):
        for s, (a, e) in enumerate(SEGMENTS):
            m[r * L + a:r * L + e, r * nseg + s] = 1.0
        pass_row[0, r * L + PASS_START:(r + 1) * L] = 1.0
    mn = m / m.sum(axis=0, keepdims=True)        # fold 1/n: x @ mn == per-segment mean
    return jnp.asarray(mn), jnp.asarray(m.T), jnp.asarray(pass_row)


def _choose_tile_rows(n_rows, width, per_buffer_bytes=2 << 20):
    """~2 MiB per (TB, W) f32 buffer -> with double-buffered input + output that's
    ~8 MiB live: comfortably inside v7x's 64 MiB VMEM (32 MiB scoped default) and
    still large enough to sit at the HBM roofline on all generations."""
    tb = max(8, (per_buffer_bytes // (width * 4)) // 8 * 8)
    return n_rows if n_rows <= tb else tb


def state_processor(x):
    """x: (B, 1, input_size) with input_size > 16. Returns (B, input_size)."""
    B, C, L = x.shape
    assert C == 1, "StateProcessor expects a single channel (squeeze(1) in forward)"
    assert L > PASS_START, "input_size must exceed ttd_slack_size=16"

    # Pack rows into lane-dense super-rows of width W = pack*L (multiple of 128).
    pack = _pick_pack(L)
    Bp = ((B + pack - 1) // pack) * pack
    x2 = x.reshape(B, L)
    if Bp != B:
        x2 = jnp.pad(x2, ((0, Bp - B), (0, 0)))     # padded rows are discarded below
    B2, W = Bp // pack, pack * L
    xw = x2.reshape(B2, W)

    mn, mt, pass_row = _build_constants(L, pack)
    S = mn.shape[1]

    TB = _choose_tile_rows(B2, W)
    grid = (pl.cdiv(B2, TB),)

    out = pl.pallas_call(
        _state_processor_kernel,
        out_shape=jax.ShapeDtypeStruct((B2, W), x.dtype),
        grid=grid,
        in_specs=[
            pl.BlockSpec((TB, W), lambda i: (i, 0)),
            pl.BlockSpec((W, S), lambda i: (0, 0)),   # constants: block index never
            pl.BlockSpec((S, W), lambda i: (0, 0)),   # changes -> fetched once and
            pl.BlockSpec((1, W), lambda i: (0, 0)),   # kept resident in VMEM
        ],
        out_specs=pl.BlockSpec((TB, W), lambda i: (i, 0)),
        compiler_params=pltpu.CompilerParams(
            dimension_semantics=("parallel",)),       # shards rows across 2 TCs on v7x
    )(xw, mn, mt, pass_row)
    # NOTE: input_output_aliases={0: 0} (review suggestion) intentionally skipped:
    # when no pad/pack copy occurs the packed view can alias the caller's buffer
    # and pallas_call aliasing would not insert a protective copy.

    return out.reshape(Bp, L)[:B]


def _reference(x):
    """Pure-JAX reference mirroring the PyTorch forward exactly."""
    B, C, L = x.shape
    x2 = x.reshape(B, L)

    def inorm(seg):
        m = jnp.mean(seg, axis=-1, keepdims=True)
        v = jnp.mean((seg - m) ** 2, axis=-1, keepdims=True)   # biased variance
        return (seg - m) / jnp.sqrt(v + EPS)

    pieces = [inorm(x2[:, a:e]) for (a, e) in SEGMENTS]
    pieces.append(x2[:, PASS_START:])
    return jnp.concatenate(pieces, axis=1)


if __name__ == "__main__":
    key = jax.random.PRNGKey(0)
    B, C, INPUT_SIZE = 2, 1, 24          # small shapes consistent with forward (>16 features)
    x = jax.random.normal(key, (B, C, INPUT_SIZE), dtype=jnp.float32)

    out = jax.block_until_ready(state_processor(x))
    ref = _reference(x)

    assert out.shape == (B, INPUT_SIZE)
    # one-pass E[x^2] - mean^2 variance: slightly looser tolerance than two-pass
    assert jnp.allclose(out, ref, atol=1e-4, rtol=1e-4), "mismatch vs reference"

    print("KERNEL_OK")
</pallas_src>

<mosaic_0001>
module attributes {stable_mosaic.version = 11 : i64} {
  func.func @_state_processor_kernel(%arg0: i32, %arg1: memref<1x384xf32, #tpu.memory_space<vmem>>, %arg2: memref<384x64xf32, #tpu.memory_space<vmem>>, %arg3: memref<64x384xf32, #tpu.memory_space<vmem>>, %arg4: memref<1x384xf32, #tpu.memory_space<vmem>>, %arg5: memref<1x384xf32, #tpu.memory_space<vmem>>) attributes {dimension_semantics = [#tpu.dimension_semantics<parallel>], iteration_bounds = array<i64: 1>, scalar_prefetch = 0 : i64, scratch_operands = 0 : i64, tpu.core_type = #tpu.core_type<tc>, window_params = [{transform_indices = @transform_0, window_bounds = array<i64: 1, 384>}, {pipeline_mode = #tpu.pipeline_mode<synchronous>, transform_indices = @transform_1, window_bounds = array<i64: 384, 64>}, {pipeline_mode = #tpu.pipeline_mode<synchronous>, transform_indices = @transform_2, window_bounds = array<i64: 64, 384>}, {pipeline_mode = #tpu.pipeline_mode<synchronous>, transform_indices = @transform_3, window_bounds = array<i64: 1, 384>}, {transform_indices = @transform_4, window_bounds = array<i64: 1, 384>}]} {
    %c0 = arith.constant 0 : index
    %c0_0 = arith.constant 0 : index
    %0 = vector.load %arg1[%c0, %c0_0] : memref<1x384xf32, #tpu.memory_space<vmem>>, vector<1x384xf32>
    %c0_1 = arith.constant 0 : index
    %c0_2 = arith.constant 0 : index
    %1 = vector.load %arg2[%c0_1, %c0_2] : memref<384x64xf32, #tpu.memory_space<vmem>>, vector<384x64xf32>
    %c0_3 = arith.constant 0 : index
    %c0_4 = arith.constant 0 : index
    %2 = vector.load %arg3[%c0_3, %c0_4] : memref<64x384xf32, #tpu.memory_space<vmem>>, vector<64x384xf32>
    %cst = arith.constant dense<0.000000e+00> : vector<1x64xf32>
    %3 = tpu.matmul %0, %1, %cst {dimension_numbers = #tpu.dot_dimension_numbers<[1], [0], [0], [1], [0, 0, 1, 1], [], []>} : vector<1x384xf32>, vector<384x64xf32>, vector<1x64xf32> -> vector<1x64xf32>
    %4 = arith.mulf %0, %0 : vector<1x384xf32>
    %cst_5 = arith.constant dense<0.000000e+00> : vector<1x64xf32>
    %5 = tpu.matmul %4, %1, %cst_5 {dimension_numbers = #tpu.dot_dimension_numbers<[1], [0], [0], [1], [0, 0, 1, 1], [], []>} : vector<1x384xf32>, vector<384x64xf32>, vector<1x64xf32> -> vector<1x64xf32>
    %6 = arith.mulf %3, %3 : vector<1x64xf32>
    %7 = arith.subf %5, %6 : vector<1x64xf32>
    %cst_6 = arith.constant 0.000000e+00 : f32
    %8 = vector.broadcast %cst_6 : f32 to vector<1x64xf32>
    %9 = arith.maximumf %7, %8 : vector<1x64xf32>
    %cst_7 = arith.constant 9.99999974E-6 : f32
    %10 = vector.broadcast %cst_7 : f32 to vector<1x64xf32>
    %11 = arith.addf %9, %10 : vector<1x64xf32>
    %12 = math.rsqrt %11 : vector<1x64xf32>
    %cst_8 = arith.constant dense<0.000000e+00> : vector<1x384xf32>
    %13 = tpu.matmul %12, %2, %cst_8 {dimension_numbers = #tpu.dot_dimension_numbers<[1], [0], [0], [1], [0, 0, 1, 1], [], []>} : vector<1x64xf32>, vector<64x384xf32>, vector<1x384xf32> -> vector<1x384xf32>
    %c0_9 = arith.constant 0 : index
    %c0_10 = arith.constant 0 : index
    %14 = vector.load %arg4[%c0_9, %c0_10] : memref<1x384xf32, #tpu.memory_space<vmem>>, vector<1x384xf32>
    %15 = arith.addf %13, %14 : vector<1x384xf32>
    %cst_11 = arith.constant 0.000000e+00 : f32
    %16 = vector.broadcast %cst_11 : f32 to vector<1x64xf32>
    %17 = arith.subf %16, %3 : vector<1x64xf32>
    %18 = arith.mulf %17, %12 : vector<1x64xf32>
    %cst_12 = arith.constant dense<0.000000e+00> : vector<1x384xf32>
    %19 = tpu.matmul %18, %2, %cst_12 {dimension_numbers = #tpu.dot_dimension_numbers<[1], [0], [0], [1], [0, 0, 1, 1], [], []>} : vector<1x64xf32>, vector<64x384xf32>, vector<1x384xf32> -> vector<1x384xf32>
    %20 = arith.mulf %0, %15 : vector<1x384xf32>
    %21 = arith.addf %20, %19 : vector<1x384xf32>
    %c0_13 = arith.constant 0 : index
    %c0_14 = arith.constant 0 : index
    %22 = vector.load %arg5[%c0_13, %c0_14] : memref<1x384xf32, #tpu.memory_space<vmem>>, vector<1x384xf32>
    tpu.vector_store %arg5[%c0_13, %c0_14], %21 {strides = array<i32>} : memref<1x384xf32, #tpu.memory_space<vmem>>, vector<1x384xf32>,
    return
  }
  func.func @transform_0(%arg0: i32) -> (i32, i32) {
    %c0_i32 = arith.constant 0 : i32
    %c0_i32_0 = arith.constant 0 : i32
    return %arg0, %c0_i32 : i32, i32
  }
  func.func @transform_1(%arg0: i32) -> (i32, i32) {
    %c0_i32 = arith.constant 0 : i32
    %c0_i32_0 = arith.constant 0 : i32
    %c0_i32_1 = arith.constant 0 : i32
    return %c0_i32, %c0_i32_0 : i32, i32
  }
  func.func @transform_2(%arg0: i32) -> (i32, i32) {
    %c0_i32 = arith.constant 0 : i32
    %c0_i32_0 = arith.constant 0 : i32
    %c0_i32_1 = arith.constant 0 : i32
    return %c0_i32, %c0_i32_0 : i32, i32
  }
  func.func @transform_3(%arg0: i32) -> (i32, i32) {
    %c0_i32 = arith.constant 0 : i32
    %c0_i32_0 = arith.constant 0 : i32
    %c0_i32_1 = arith.constant 0 : i32
    return %c0_i32, %c0_i32_0 : i32, i32
  }
  func.func @transform_4(%arg0: i32) -> (i32, i32) {
    %c0_i32 = arith.constant 0 : i32
    %c0_i32_0 = arith.constant 0 : i32
    return %arg0, %c0_i32 : i32, i32
  }
}

</mosaic_0001>

<llo_original>
// kernel: tpu_custom_call.1
$region0: #{tpu_custom_call.1}
  #allocation0 [shape = 'u32[]', space=smem, size = 0x4, offset = 0x4, fixed_abs, tag = 'smem constant byte address 0x4 - core index']
  #allocation1 [shape = 'u32[144,128]{1,0:T(1,128)}', space=vmem, size = 0x12000, scoped, tag = 'internal scratch']
  %s0 = inlined_call_operand.vmem [shape: f32[1,384], index: 0, kind: input, shape index: {}]
  %s1 = inlined_call_operand.vmem [shape: f32[384,64], index: 1, kind: input, shape index: {}]
  %s2 = inlined_call_operand.vmem [shape: f32[64,384], index: 2, kind: input, shape index: {}]
  %s3 = inlined_call_operand.vmem [shape: f32[1,384], index: 3, kind: input, shape index: {}]
  %s4 = inlined_call_operand.hbm [shape: f32[1,384], index: 4, kind: output, shape index: {}]
  %s5 = sld [smem:[#allocation0]]
  $region26: #{tpu_custom_call.1} parent=0
    _
  %s7 = ssub.s32 1, %s5
  %s8 = scalar_select 0, %s7, %s5
  $region1: #{tpu_custom_call.1} parent=0
    #allocation2 [shape = 'u8[1536]{0}', space=vmem, size = 0x800, scoped, tag = 'output window, operand 0, single buffered']
    #allocation3 [shape = 's32[1]{0}', space=sflag, size = 0x4, scoped, tag = 'scoped memory for tpu_custom_call.1']
    %9 = vsyncpa [#allocation3], 0
    // Predicated region
    $region2: #{tpu_custom_call.1} parent=1 // pred_check
      _
    $region3: #{tpu_custom_call.1} parent=1 // pred_check_branch
      %11 = sbr.rel (0) target = $region5
    $region4: #{tpu_custom_call.1} parent=1 // pred_region
      _
    $region5: #{tpu_custom_call.1} parent=1 // pred_fallthru
      _
    // Predicated region
    $region6: #{tpu_custom_call.1} parent=1 // pred_check
      _
    $region7: #{tpu_custom_call.1} parent=1 // pred_check_branch
      %13 = sbr.rel (0) target = $region9
    $region8: #{tpu_custom_call.1} parent=1 // pred_region
      _
    $region9: #{tpu_custom_call.1} parent=1 // pred_fallthru
      _
    // Predicated region
    $region10: #{tpu_custom_call.1} parent=1 // pred_check
      _
    $region11: #{tpu_custom_call.1} parent=1 // pred_check_branch
      %15 = sbr.rel (0) target = $region13
    $region12: #{tpu_custom_call.1} parent=1 // pred_region
      _
    $region13: #{tpu_custom_call.1} parent=1 // pred_fallthru
      _
    // Predicated region
    $region14: #{tpu_custom_call.1} parent=1 // pred_check
      _
    $region15: #{tpu_custom_call.1} parent=1 // pred_check_branch
      %17 = sbr.rel (0) target = $region17
    $region16: #{tpu_custom_call.1} parent=1 // pred_region
      _
    $region17: #{tpu_custom_call.1} parent=1 // pred_fallthru
      _
    %v18 = vld [vmem:[%s0] sm:$0x7]
    %v19 = vld [vmem:[%s1] sm:$0xff]
    %v20 = vld [vmem:[%s1 + $0x8] sm:$0xff]
    %v21 = vld [vmem:[%s1 + $0x10] sm:$0xff]
    %v22 = vld [vmem:[%s1 + $0x18] sm:$0xff]
    %v23 = vld [vmem:[%s1 + $0x20] sm:$0xff]
    %v24 = vld [vmem:[%s1 + $0x28] sm:$0xff]
    %v25 = vld [vmem:[%s1 + $0x30] sm:$0xff]
    %v26 = vld [vmem:[%s1 + $0x38] sm:$0xff]
    %v27 = vld [vmem:[%s1 + $0x40] sm:$0xff]
    %v28 = vld [vmem:[%s1 + $0x48] sm:$0xff]
    %v29 = vld [vmem:[%s1 + $0x50] sm:$0xff]
    %v30 = vld [vmem:[%s1 + $0x58] sm:$0xff]
    %v31 = vld [vmem:[%s1 + $0x60] sm:$0xff]
    %v32 = vld [vmem:[%s1 + $0x68] sm:$0xff]
    %v33 = vld [vmem:[%s1 + $0x70] sm:$0xff]
    %v34 = vld [vmem:[%s1 + $0x78] sm:$0xff]
    %v35 = vld [vmem:[%s1 + $0x80] sm:$0xff]
    %v36 = vld [vmem:[%s1 + $0x88] sm:$0xff]
    %v37 = vld [vmem:[%s1 + $0x90] sm:$0xff]
    %v38 = vld [vmem:[%s1 + $0x98] sm:$0xff]
    %v39 = vld [vmem:[%s1 + $0xa0] sm:$0xff]
    %v40 = vld [vmem:[%s1 + $0xa8] sm:$0xff]
    %v41 = vld [vmem:[%s1 + $0xb0] sm:$0xff]
    %v42 = vld [vmem:[%s1 + $0xb8] sm:$0xff]
    %v43 = vld [vmem:[%s1 + $0xc0] sm:$0xff]
    %v44 = vld [vmem:[%s1 + $0xc8] sm:$0xff]
    %v45 = vld [vmem:[%s1 + $0xd0] sm:$0xff]
    %v46 = vld [vmem:[%s1 + $0xd8] sm:$0xff]
    %v47 = vld [vmem:[%s1 + $0xe0] sm:$0xff]
    %v48 = vld [vmem:[%s1 + $0xe8] sm:$0xff]
    %v49 = vld [vmem:[%s1 + $0xf0] sm:$0xff]
    %v50 = vld [vmem:[%s1 + $0xf8] sm:$0xff]
    %v51 = vld [vmem:[%s1 + $0x100] sm:$0xff]
    %v52 = vld [vmem:[%s1 + $0x108] sm:$0xff]
    %v53 = vld [vmem:[%s1 + $0x110] sm:$0xff]
    %v54 = vld [vmem:[%s1 + $0x118] sm:$0xff]
    %v55 = vld [vmem:[%s1 + $0x120] sm:$0xff]
    %v56 = vld [vmem:[%s1 + $0x128] sm:$0xff]
    %v57 = vld [vmem:[%s1 + $0x130] sm:$0xff]
    %v58 = vld [vmem:[%s1 + $0x138] sm:$0xff]
    %v59 = vld [vmem:[%s1 + $0x140] sm:$0xff]
    %v60 = vld [vmem:[%s1 + $0x148] sm:$0xff]
    %v61 = vld [vmem:[%s1 + $0x150] sm:$0xff]
    %v62 = vld [vmem:[%s1 + $0x158] sm:$0xff]
    %v63 = vld [vmem:[%s1 + $0x160] sm:$0xff]
    %v64 = vld [vmem:[%s1 + $0x168] sm:$0xff]
    %v65 = vld [vmem:[%s1 + $0x170] sm:$0xff]
    %v66 = vld [vmem:[%s1 + $0x178] sm:$0xff]
    %v67 = vld [vmem:[%s2] sm:$0xff]
    %v68 = vld [vmem:[%s2 + $0x8] sm:$0xff]
    %v69 = vld [vmem:[%s2 + $0x10] sm:$0xff]
    %v70 = vld [vmem:[%s2 + $0x18] sm:$0xff]
    %v71 = vld [vmem:[%s2 + $0x20] sm:$0xff]
    %v72 = vld [vmem:[%s2 + $0x28] sm:$0xff]
    %v73 = vld [vmem:[%s2 + $0x30] sm:$0xff]
    %v74 = vld [vmem:[%s2 + $0x38] sm:$0xff]
    %v75 = vld [vmem:[%s2 + $0x40] sm:$0xff]
    %v76 = vld [vmem:[%s2 + $0x48] sm:$0xff]
    %v77 = vld [vmem:[%s2 + $0x50] sm:$0xff]
    %v78 = vld [vmem:[%s2 + $0x58] sm:$0xff]
    %v79 = vld [vmem:[%s2 + $0x60] sm:$0xff]
    %v80 = vld [vmem:[%s2 + $0x68] sm:$0xff]
    %v81 = vld [vmem:[%s2 + $0x70] sm:$0xff]
    %v82 = vld [vmem:[%s2 + $0x78] sm:$0xff]
    %v83 = vld [vmem:[%s2 + $0x80] sm:$0xff]
    %v84 = vld [vmem:[%s2 + $0x88] sm:$0xff]
    %v85 = vld [vmem:[%s2 + $0x90] sm:$0xff]
    %v86 = vld [vmem:[%s2 + $0x98] sm:$0xff]
    %v87 = vld [vmem:[%s2 + $0xa0] sm:$0xff]
    %v88 = vld [vmem:[%s2 + $0xa8] sm:$0xff]
    %v89 = vld [vmem:[%s2 + $0xb0] sm:$0xff]
    %v90 = vld [vmem:[%s2 + $0xb8] sm:$0xff]
    %v92 = vlaneseq
    %v93 = vshrl.u32 %v92, 7
    %v94 = vsub.s32 0, %v93
    %v95 = vrot.slane %v18, %v94
    %v96 = vlaneseq
    %v97 = vshrl.u32 %v96, 7
    %v98 = vsub.s32 1, %v97
    %v99 = vrot.slane %v18, %v98
    %v100 = vlaneseq
    %v101 = vshrl.u32 %v100, 7
    %v102 = vsub.s32 2, %v101
    %v103 = vrot.slane %v18, %v102
    %107 = vmatprep.subr.mxu0 0.0
    %108 = vmatpush1.msra.mxu0 %v19
    %109 = vmatprep.subr.mxu0 0.0
    %110 = vmatpush1.msra.mxu0 %v20
    %111 = vmatprep.subr.mxu0 0.0
    %112 = vmatpush1.msra.mxu0 %v21
    %113 = vmatprep.subr.mxu0 0.0
    %114 = vmatpush1.msra.mxu0 %v22
    %115 = vmatprep.subr.mxu0 0.0
    %116 = vmatpush1.msra.mxu0 %v23
    %117 = vmatprep.subr.mxu0 0.0
    %118 = vmatpush1.msra.mxu0 %v24
    %119 = vmatprep.subr.mxu0 0.0
    %120 = vmatpush1.msra.mxu0 %v25
    %121 = vmatprep.subr.mxu0 0.0
    %122 = vmatpush1.msra.mxu0 %v26
    %123 = vmatprep.subr.mxu0 0.0
    %124 = vmatpush1.msra.mxu0 %v27
    %125 = vmatprep.subr.mxu0 0.0
    %126 = vmatpush1.msra.mxu0 %v28
    %127 = vmatprep.subr.mxu0 0.0
    %128 = vmatpush1.msra.mxu0 %v29
    %129 = vmatprep.subr.mxu0 0.0
    %130 = vmatpush1.msra.mxu0 %v30
    %131 = vmatprep.subr.mxu0 0.0
    %132 = vmatpush1.msra.mxu0 %v31
    %133 = vmatprep.subr.mxu0 0.0
    %134 = vmatpush1.msra.mxu0 %v32
    %135 = vmatprep.subr.mxu0 0.0
    %136 = vmatpush1.msra.mxu0 %v33
    %137 = vmatprep.subr.mxu0 0.0
    %138 = vmatpush1.msra.mxu0 %v34
    %139 = vmatprep.subr.mxu0 0.0
    %140 = vmatpush1.msra.mxu0 %v35
    %141 = vmatprep.subr.mxu0 0.0
    %142 = vmatpush1.msra.mxu0 %v36
    %143 = vmatprep.subr.mxu0 0.0
    %144 = vmatpush1.msra.mxu0 %v37
    %145 = vmatprep.subr.mxu0 0.0
    %146 = vmatpush1.msra.mxu0 %v38
    %147 = vmatprep.subr.mxu0 0.0
    %148 = vmatpush1.msra.mxu0 %v39
    %149 = vmatprep.subr.mxu0 0.0
    %150 = vmatpush1.msra.mxu0 %v40
    %151 = vmatprep.subr.mxu0 0.0
    %152 = vmatpush1.msra.mxu0 %v41
    %153 = vmatprep.subr.mxu0 0.0
    %154 = vmatpush1.msra.mxu0 %v42
    %155 = vmatprep.subr.mxu0 0.0
    %156 = vmatpush1.msra.mxu0 %v43
    %157 = vmatprep.subr.mxu0 0.0
    %158 = vmatpush1.msra.mxu0 %v44
    %159 = vmatprep.subr.mxu0 0.0
    %160 = vmatpush1.msra.mxu0 %v45
    %161 = vmatprep.subr.mxu0 0.0
    %162 = vmatpush1.msra.mxu0 %v46
    %163 = vmatprep.subr.mxu0 0.0
    %164 = vmatpush1.msra.mxu0 %v47
    %165 = vmatprep.subr.mxu0 0.0
    %166 = vmatpush1.msra.mxu0 %v48
    %167 = vmatprep.subr.mxu0 0.0
    %168 = vmatpush1.msra.mxu0 %v49
    %169 = vmatprep.subr.mxu0 0.0
    %170 = vmatpush1.msra.mxu0 %v50
    %171 = vmatprep.mubr.f32.mxu0 %v99
    %172 = vmatmul.mubr.f32.gmra.mrb[0].mxu0 %v95
    %v173 = vpop.f32.mrb[0].mxu0
    %v174 = vadd.f32 0.0, %v173
    %v175 = vpop.f32.mrb[0].mxu0
    %176 = vdwg.mxu0
    %177 = vmatprep.subr.mxu0 0.0
    %178 = vmatpush1.msra.mxu0 %v51
    %179 = vmatprep.subr.mxu0 0.0
    %180 = vmatpush1.msra.mxu0 %v52
    %181 = vmatprep.subr.mxu0 0.0
    %182 = vmatpush1.msra.mxu0 %v53
    %183 = vmatprep.subr.mxu0 0.0
    %184 = vmatpush1.msra.mxu0 %v54
    %185 = vmatprep.subr.mxu0 0.0
    %186 = vmatpush1.msra.mxu0 %v55
    %187 = vmatprep.subr.mxu0 0.0
    %188 = vmatpush1.msra.mxu0 %v56
    %189 = vmatprep.subr.mxu0 0.0
    %190 = vmatpush1.msra.mxu0 %v57
    %191 = vmatprep.subr.mxu0 0.0
    %192 = vmatpush1.msra.mxu0 %v58
    %193 = vmatprep.subr.mxu0 0.0
    %194 = vmatpush1.msra.mxu0 %v59
    %195 = vmatprep.subr.mxu0 0.0
    %196 = vmatpush1.msra.mxu0 %v60
    %197 = vmatprep.subr.mxu0 0.0
    %198 = vmatpush1.msra.mxu0 %v61
    %199 = vmatprep.subr.mxu0 0.0
    %200 = vmatpush1.msra.mxu0 %v62
    %201 = vmatprep.subr.mxu0 0.0
    %202 = vmatpush1.msra.mxu0 %v63
    %203 = vmatprep.subr.mxu0 0.0
    %204 = vmatpush1.msra.mxu0 %v64
    %205 = vmatprep.subr.mxu0 0.0
    %206 = vmatpush1.msra.mxu0 %v65
    %207 = vmatprep.subr.mxu0 0.0
    %208 = vmatpush1.msra.mxu0 %v66
    %209 = vmatprep.subr.mxu0 0.0
    %210 = vmatpush1.msra.mxu0 0.0
    %211 = vmatprep.subr.mxu0 0.0
    %212 = vmatpush1.msra.mxu0 0.0
    %213 = vmatprep.subr.mxu0 0.0
    %214 = vmatpush1.msra.mxu0 0.0
    %215 = vmatprep.subr.mxu0 0.0
    %216 = vmatpush1.msra.mxu0 0.0
    %217 = vmatprep.subr.mxu0 0.0
    %218 = vmatpush1.msra.mxu0 0.0
    %219 = vmatprep.subr.mxu0 0.0
    %220 = vmatpush1.msra.mxu0 0.0
    %221 = vmatprep.subr.mxu0 0.0
    %222 = vmatpush1.msra.mxu0 0.0
    %223 = vmatprep.subr.mxu0 0.0
    %224 = vmatpush1.msra.mxu0 0.0
    %225 = vmatprep.subr.mxu0 0.0
    %226 = vmatpush1.msra.mxu0 0.0
    %227 = vmatprep.subr.mxu0 0.0
    %228 = vmatpush1.msra.mxu0 0.0
    %229 = vmatprep.subr.mxu0 0.0
    %230 = vmatpush1.msra.mxu0 0.0
    %231 = vmatprep.subr.mxu0 0.0
    %232 = vmatpush1.msra.mxu0 0.0
    %233 = vmatprep.subr.mxu0 0.0
    %234 = vmatpush1.msra.mxu0 0.0
    %235 = vmatprep.subr.mxu0 0.0
    %236 = vmatpush1.msra.mxu0 0.0
    %237 = vmatprep.subr.mxu0 0.0
    %238 = vmatpush1.msra.mxu0 0.0
    %239 = vmatprep.subr.mxu0 0.0
    %240 = vmatpush1.msra.mxu0 0.0
    %241 = vmatprep.mubr.f32.mxu0 0.0
    %242 = vmatmul.mubr.f32.gmra.mrb[0].mxu0 %v103
    %v243 = vpop.f32.mrb[0].mxu0
    %v244 = vadd.f32 %v174, %v243
    %v245 = vpop.f32.mrb[0].mxu0
    %246 = vdwg.mxu0
    %v247 = vmul.f32 %v18, %v18
    %v249 = vlaneseq
    %v250 = vshrl.u32 %v249, 7
    %v251 = vsub.s32 0, %v250
    %v252 = vrot.slane %v247, %v251
    %v253 = vlaneseq
    %v254 = vshrl.u32 %v253, 7
    %v255 = vsub.s32 1, %v254
    %v256 = vrot.slane %v247, %v255
    %v257 = vlaneseq
    %v258 = vshrl.u32 %v257, 7
    %v259 = vsub.s32 2, %v258
    %v260 = vrot.slane %v247, %v259
    %264 = vmatprep.subr.mxu0 0.0
    %265 = vmatpush1.msra.mxu0 %v19
    %266 = vmatprep.subr.mxu0 0.0
    %267 = vmatpush1.msra.mxu0 %v20
    %268 = vmatprep.subr.mxu0 0.0
    %269 = vmatpush1.msra.mxu0 %v21
    %270 = vmatprep.subr.mxu0 0.0
    %271 = vmatpush1.msra.mxu0 %v22
    %272 = vmatprep.subr.mxu0 0.0
    %273 = vmatpush1.msra.mxu0 %v23
    %274 = vmatprep.subr.mxu0 0.0
    %275 = vmatpush1.msra.mxu0 %v24
    %276 = vmatprep.subr.mxu0 0.0
    %277 = vmatpush1.msra.mxu0 %v25
    %278 = vmatprep.subr.mxu0 0.0
    %279 = vmatpush1.msra.mxu0 %v26
    %280 = vmatprep.subr.mxu0 0.0
    %281 = vmatpush1.msra.mxu0 %v27
    %282 = vmatprep.subr.mxu0 0.0
    %283 = vmatpush1.msra.mxu0 %v28
    %284 = vmatprep.subr.mxu0 0.0
    %285 = vmatpush1.msra.mxu0 %v29
    %286 = vmatprep.subr.mxu0 0.0
    %287 = vmatpush1.msra.mxu0 %v30
    %288 = vmatprep.subr.mxu0 0.0
    %289 = vmatpush1.msra.mxu0 %v31
    %290 = vmatprep.subr.mxu0 0.0
    %291 = vmatpush1.msra.mxu0 %v32
    %292 = vmatprep.subr.mxu0 0.0
    %293 = vmatpush1.msra.mxu0 %v33
    %294 = vmatprep.subr.mxu0 0.0
    %295 = vmatpush1.msra.mxu0 %v34
    %296 = vmatprep.subr.mxu0 0.0
    %297 = vmatpush1.msra.mxu0 %v35
    %298 = vmatprep.subr.mxu0 0.0
    %299 = vmatpush1.msra.mxu0 %v36
    %300 = vmatprep.subr.mxu0 0.0
    %301 = vmatpush1.msra.mxu0 %v37
    %302 = vmatprep.subr.mxu0 0.0
    %303 = vmatpush1.msra.mxu0 %v38
    %304 = vmatprep.subr.mxu0 0.0
    %305 = vmatpush1.msra.mxu0 %v39
    %306 = vmatprep.subr.mxu0 0.0
    %307 = vmatpush1.msra.mxu0 %v40
    %308 = vmatprep.subr.mxu0 0.0
    %309 = vmatpush1.msra.mxu0 %v41
    %310 = vmatprep.subr.mxu0 0.0
    %311 = vmatpush1.msra.mxu0 %v42
    %312 = vmatprep.subr.mxu0 0.0
    %313 = vmatpush1.msra.mxu0 %v43
    %314 = vmatprep.subr.mxu0 0.0
    %315 = vmatpush1.msra.mxu0 %v44
    %316 = vmatprep.subr.mxu0 0.0
    %317 = vmatpush1.msra.mxu0 %v45
    %318 = vmatprep.subr.mxu0 0.0
    %319 = vmatpush1.msra.mxu0 %v46
    %320 = vmatprep.subr.mxu0 0.0
    %321 = vmatpush1.msra.mxu0 %v47
    %322 = vmatprep.subr.mxu0 0.0
    %323 = vmatpush1.msra.mxu0 %v48
    %324 = vmatprep.subr.mxu0 0.0
    %325 = vmatpush1.msra.mxu0 %v49
    %326 = vmatprep.subr.mxu0 0.0
    %327 = vmatpush1.msra.mxu0 %v50
    %328 = vmatprep.mubr.f32.mxu0 %v256
    %329 = vmatmul.mubr.f32.gmra.mrb[0].mxu0 %v252
    %v330 = vpop.f32.mrb[0].mxu0
    %v331 = vadd.f32 0.0, %v330
    %v332 = vpop.f32.mrb[0].mxu0
    %333 = vdwg.mxu0
    %334 = vmatprep.subr.mxu0 0.0
    %335 = vmatpush1.msra.mxu0 %v51
    %336 = vmatprep.subr.mxu0 0.0
    %337 = vmatpush1.msra.mxu0 %v52
    %338 = vmatprep.subr.mxu0 0.0
    %339 = vmatpush1.msra.mxu0 %v53
    %340 = vmatprep.subr.mxu0 0.0
    %341 = vmatpush1.msra.mxu0 %v54
    %342 = vmatprep.subr.mxu0 0.0
    %343 = vmatpush1.msra.mxu0 %v55
    %344 = vmatprep.subr.mxu0 0.0
    %345 = vmatpush1.msra.mxu0 %v56
    %346 = vmatprep.subr.mxu0 0.0
    %347 = vmatpush1.msra.mxu0 %v57
    %348 = vmatprep.subr.mxu0 0.0
    %349 = vmatpush1.msra.mxu0 %v58
    %350 = vmatprep.subr.mxu0 0.0
    %351 = vmatpush1.msra.mxu0 %v59
    %352 = vmatprep.subr.mxu0 0.0
    %353 = vmatpush1.msra.mxu0 %v60
    %354 = vmatprep.subr.mxu0 0.0
    %355 = vmatpush1.msra.mxu0 %v61
    %356 = vmatprep.subr.mxu0 0.0
    %357 = vmatpush1.msra.mxu0 %v62
    %358 = vmatprep.subr.mxu0 0.0
    %359 = vmatpush1.msra.mxu0 %v63
    %360 = vmatprep.subr.mxu0 0.0
    %361 = vmatpush1.msra.mxu0 %v64
    %362 = vmatprep.subr.mxu0 0.0
    %363 = vmatpush1.msra.mxu0 %v65
    %364 = vmatprep.subr.mxu0 0.0
    %365 = vmatpush1.msra.mxu0 %v66
    %366 = vmatprep.subr.mxu0 0.0
    %367 = vmatpush1.msra.mxu0 0.0
    %368 = vmatprep.subr.mxu0 0.0
    %369 = vmatpush1.msra.mxu0 0.0
    %370 = vmatprep.subr.mxu0 0.0
    %371 = vmatpush1.msra.mxu0 0.0
    %372 = vmatprep.subr.mxu0 0.0
    %373 = vmatpush1.msra.mxu0 0.0
    %374 = vmatprep.subr.mxu0 0.0
    %375 = vmatpush1.msra.mxu0 0.0
    %376 = vmatprep.subr.mxu0 0.0
    %377 = vmatpush1.msra.mxu0 0.0
    %378 = vmatprep.subr.mxu0 0.0
    %379 = vmatpush1.msra.mxu0 0.0
    %380 = vmatprep.subr.mxu0 0.0
    %381 = vmatpush1.msra.mxu0 0.0
    %382 = vmatprep.subr.mxu0 0.0
    %383 = vmatpush1.msra.mxu0 0.0
    %384 = vmatprep.subr.mxu0 0.0
    %385 = vmatpush1.msra.mxu0 0.0
    %386 = vmatprep.subr.mxu0 0.0
    %387 = vmatpush1.msra.mxu0 0.0
    %388 = vmatprep.subr.mxu0 0.0
    %389 = vmatpush1.msra.mxu0 0.0
    %390 = vmatprep.subr.mxu0 0.0
    %391 = vmatpush1.msra.mxu0 0.0
    %392 = vmatprep.subr.mxu0 0.0
    %393 = vmatpush1.msra.mxu0 0.0
    %394 = vmatprep.subr.mxu0 0.0
    %395 = vmatpush1.msra.mxu0 0.0
    %396 = vmatprep.subr.mxu0 0.0
    %397 = vmatpush1.msra.mxu0 0.0
    %398 = vmatprep.mubr.f32.mxu0 0.0
    %399 = vmatmul.mubr.f32.gmra.mrb[0].mxu0 %v260
    %v400 = vpop.f32.mrb[0].mxu0
    %v401 = vadd.f32 %v331, %v400
    %v402 = vpop.f32.mrb[0].mxu0
    %403 = vdwg.mxu0
    %v404 = vmul.f32 %v244, %v244
    %v405 = vsub.f32 %v401, %v404
    %v406 = vmax.f32 %v405, 0.0
    %v407 = vadd.f32 %v406, 1e-05
    %v408 = vrsqrt.pop %v407
    %v409 = vld [vmem:[%s3] sm:$0x7]
    %v411 = vlaneseq
    %v412 = vshrl.u32 %v411, 7
    %v413 = vsub.s32 0, %v412
    %v414 = vrot.slane %v409, %v413
    %v415 = vlaneseq
    %v416 = vshrl.u32 %v415, 7
    %v417 = vsub.s32 1, %v416
    %v418 = vrot.slane %v409, %v417
    %v419 = vlaneseq
    %v420 = vshrl.u32 %v419, 7
    %v421 = vsub.s32 2, %v420
    %v422 = vrot.slane %v409, %v421
    %vm426 = vcmask 523264
    %v428 = vsel %vm426, %v408, 0
    %430 = vmatprep.subr.mxu0 %v68
    %431 = vmatpush1.msra.mxu0 %v67
    %432 = vmatprep.subr.mxu0 %v71
    %433 = vmatpush1.msra.mxu0 %v70
    %434 = vmatprep.subr.mxu0 %v74
    %435 = vmatpush1.msra.mxu0 %v73
    %436 = vmatprep.subr.mxu0 %v77
    %437 = vmatpush1.msra.mxu0 %v76
    %438 = vmatprep.subr.mxu0 %v80
    %439 = vmatpush1.msra.mxu0 %v79
    %440 = vmatprep.subr.mxu0 %v83
    %441 = vmatpush1.msra.mxu0 %v82
    %442 = vmatprep.subr.mxu0 %v86
    %443 = vmatpush1.msra.mxu0 %v85
    %444 = vmatprep.subr.mxu0 %v89
    %445 = vmatpush1.msra.mxu0 %v88
    %446 = vmatprep.subr.mxu0 0.0
    %447 = vmatpush1.msra.mxu0 0.0
    %448 = vmatprep.subr.mxu0 0.0
    %449 = vmatpush1.msra.mxu0 0.0
    %450 = vmatprep.subr.mxu0 0.0
    %451 = vmatpush1.msra.mxu0 0.0
    %452 = vmatprep.subr.mxu0 0.0
    %453 = vmatpush1.msra.mxu0 0.0
    %454 = vmatprep.subr.mxu0 0.0
    %455 = vmatpush1.msra.mxu0 0.0
    %456 = vmatprep.subr.mxu0 0.0
    %457 = vmatpush1.msra.mxu0 0.0
    %458 = vmatprep.subr.mxu0 0.0
    %459 = vmatpush1.msra.mxu0 0.0
    %460 = vmatprep.subr.mxu0 0.0
    %461 = vmatpush1.msra.mxu0 0.0
    %462 = vmatprep.subr.mxu0 0.0
    %463 = vmatpush1.msra.mxu0 0.0
    %464 = vmatprep.subr.mxu0 0.0
    %465 = vmatpush1.msra.mxu0 0.0
    %466 = vmatprep.subr.mxu0 0.0
    %467 = vmatpush1.msra.mxu0 0.0
    %468 = vmatprep.subr.mxu0 0.0
    %469 = vmatpush1.msra.mxu0 0.0
    %470 = vmatprep.subr.mxu0 0.0
    %471 = vmatpush1.msra.mxu0 0.0
    %472 = vmatprep.subr.mxu0 0.0
    %473 = vmatpush1.msra.mxu0 0.0
    %474 = vmatprep.subr.mxu0 0.0
    %475 = vmatpush1.msra.mxu0 0.0
    %476 = vmatprep.subr.mxu0 0.0
    %477 = vmatpush1.msra.mxu0 0.0
    %478 = vmatprep.subr.mxu0 0.0
    %479 = vmatpush1.msra.mxu0 0.0
    %480 = vmatprep.subr.mxu0 0.0
    %481 = vmatpush1.msra.mxu0 0.0
    %482 = vmatprep.subr.mxu0 0.0
    %483 = vmatpush1.msra.mxu0 0.0
    %484 = vmatprep.subr.mxu0 0.0
    %485 = vmatpush1.msra.mxu0 0.0
    %486 = vmatprep.subr.mxu0 0.0
    %487 = vmatpush1.msra.mxu0 0.0
    %488 = vmatprep.subr.mxu0 0.0
    %489 = vmatpush1.msra.mxu0 0.0
    %490 = vmatprep.subr.mxu0 0.0
    %491 = vmatpush1.msra.mxu0 0.0
    %492 = vmatprep.subr.mxu0 0.0
    %493 = vmatpush1.msra.mxu0 0.0
    %494 = vmatprep.mubr.f32.mxu0 0.0
    %495 = vmatmul.mubr.f32.gmra.mrb[0].mxu0 %v428
    %v496 = vpop.f32.mrb[0].mxu0
    %v497 = vadd.f32 %v414, %v496
    %v498 = vpop.f32.mrb[0].mxu0
    %v499 = vadd.f32 %v418, %v498
    %500 = vdwg.mxu0
    %501 = vmatprep.subr.mxu0 0.0
    %502 = vmatpush1.msra.mxu0 %v69
    %503 = vmatprep.subr.mxu0 0.0
    %504 = vmatpush1.msra.mxu0 %v72
    %505 = vmatprep.subr.mxu0 0.0
    %506 = vmatpush1.msra.mxu0 %v75
    %507 = vmatprep.subr.mxu0 0.0
    %508 = vmatpush1.msra.mxu0 %v78
    %509 = vmatprep.subr.mxu0 0.0
    %510 = vmatpush1.msra.mxu0 %v81
    %511 = vmatprep.subr.mxu0 0.0
    %512 = vmatpush1.msra.mxu0 %v84
    %513 = vmatprep.subr.mxu0 0.0
    %514 = vmatpush1.msra.mxu0 %v87
    %515 = vmatprep.subr.mxu0 0.0
    %516 = vmatpush1.msra.mxu0 %v90
    %517 = vmatprep.subr.mxu0 0.0
    %518 = vmatpush1.msra.mxu0 0.0
    %519 = vmatprep.subr.mxu0 0.0
    %520 = vmatpush1.msra.mxu0 0.0
    %521 = vmatprep.subr.mxu0 0.0
    %522 = vmatpush1.msra.mxu0 0.0
    %523 = vmatprep.subr.mxu0 0.0
    %524 = vmatpush1.msra.mxu0 0.0
    %525 = vmatprep.subr.mxu0 0.0
    %526 = vmatpush1.msra.mxu0 0.0
    %527 = vmatprep.subr.mxu0 0.0
    %528 = vmatpush1.msra.mxu0 0.0
    %529 = vmatprep.subr.mxu0 0.0
    %530 = vmatpush1.msra.mxu0 0.0
    %531 = vmatprep.subr.mxu0 0.0
    %532 = vmatpush1.msra.mxu0 0.0
    %533 = vmatprep.subr.mxu0 0.0
    %534 = vmatpush1.msra.mxu0 0.0
    %535 = vmatprep.subr.mxu0 0.0
    %536 = vmatpush1.msra.mxu0 0.0
    %537 = vmatprep.subr.mxu0 0.0
    %538 = vmatpush1.msra.mxu0 0.0
    %539 = vmatprep.subr.mxu0 0.0
    %540 = vmatpush1.msra.mxu0 0.0
    %541 = vmatprep.subr.mxu0 0.0
    %542 = vmatpush1.msra.mxu0 0.0
    %543 = vmatprep.subr.mxu0 0.0
    %544 = vmatpush1.msra.mxu0 0.0
    %545 = vmatprep.subr.mxu0 0.0
    %546 = vmatpush1.msra.mxu0 0.0
    %547 = vmatprep.subr.mxu0 0.0
    %548 = vmatpush1.msra.mxu0 0.0
    %549 = vmatprep.subr.mxu0 0.0
    %550 = vmatpush1.msra.mxu0 0.0
    %551 = vmatprep.subr.mxu0 0.0
    %552 = vmatpush1.msra.mxu0 0.0
    %553 = vmatprep.subr.mxu0 0.0
    %554 = vmatpush1.msra.mxu0 0.0
    %555 = vmatprep.subr.mxu0 0.0
    %556 = vmatpush1.msra.mxu0 0.0
    %557 = vmatprep.subr.mxu0 0.0
    %558 = vmatpush1.msra.mxu0 0.0
    %559 = vmatprep.subr.mxu0 0.0
    %560 = vmatpush1.msra.mxu0 0.0
    %561 = vmatprep.subr.mxu0 0.0
    %562 = vmatpush1.msra.mxu0 0.0
    %563 = vmatprep.subr.mxu0 0.0
    %564 = vmatpush1.msra.mxu0 0.0
    %565 = vmatprep.mubr.f32.mxu0 0.0
    %566 = vmatmul.mubr.f32.gmra.mrb[0].mxu0 %v428
    %v567 = vpop.f32.mrb[0].mxu0
    %v568 = vadd.f32 %v422, %v567
    %v569 = vpop.f32.mrb[0].mxu0
    %570 = vdwg.mxu0
    %v571 = vsub.f32 0.0, %v244
    %v572 = vmul.f32 %v571, %v408
    %v574 = vsel %vm426, %v572, 0
    %576 = vmatprep.subr.mxu0 %v68
    %577 = vmatpush1.msra.mxu0 %v67
    %578 = vmatprep.subr.mxu0 %v71
    %579 = vmatpush1.msra.mxu0 %v70
    %580 = vmatprep.subr.mxu0 %v74
    %581 = vmatpush1.msra.mxu0 %v73
    %582 = vmatprep.subr.mxu0 %v77
    %583 = vmatpush1.msra.mxu0 %v76
    %584 = vmatprep.subr.mxu0 %v80
    %585 = vmatpush1.msra.mxu0 %v79
    %586 = vmatprep.subr.mxu0 %v83
    %587 = vmatpush1.msra.mxu0 %v82
    %588 = vmatprep.subr.mxu0 %v86
    %589 = vmatpush1.msra.mxu0 %v85
    %590 = vmatprep.subr.mxu0 %v89
    %591 = vmatpush1.msra.mxu0 %v88
    %592 = vmatprep.subr.mxu0 0.0
    %593 = vmatpush1.msra.mxu0 0.0
    %594 = vmatprep.subr.mxu0 0.0
    %595 = vmatpush1.msra.mxu0 0.0
    %596 = vmatprep.subr.mxu0 0.0
    %597 = vmatpush1.msra.mxu0 0.0
    %598 = vmatprep.subr.mxu0 0.0
    %599 = vmatpush1.msra.mxu0 0.0
    %600 = vmatprep.subr.mxu0 0.0
    %601 = vmatpush1.msra.mxu0 0.0
    %602 = vmatprep.subr.mxu0 0.0
    %603 = vmatpush1.msra.mxu0 0.0
    %604 = vmatprep.subr.mxu0 0.0
    %605 = vmatpush1.msra.mxu0 0.0
    %606 = vmatprep.subr.mxu0 0.0
    %607 = vmatpush1.msra.mxu0 0.0
    %608 = vmatprep.subr.mxu0 0.0
    %609 = vmatpush1.msra.mxu0 0.0
    %610 = vmatprep.subr.mxu0 0.0
    %611 = vmatpush1.msra.mxu0 0.0
    %612 = vmatprep.subr.mxu0 0.0
    %613 = vmatpush1.msra.mxu0 0.0
    %614 = vmatprep.subr.mxu0 0.0
    %615 = vmatpush1.msra.mxu0 0.0
    %616 = vmatprep.subr.mxu0 0.0
    %617 = vmatpush1.msra.mxu0 0.0
    %618 = vmatprep.subr.mxu0 0.0
    %619 = vmatpush1.msra.mxu0 0.0
    %620 = vmatprep.subr.mxu0 0.0
    %621 = vmatpush1.msra.mxu0 0.0
    %622 = vmatprep.subr.mxu0 0.0
    %623 = vmatpush1.msra.mxu0 0.0
    %624 = vmatprep.subr.mxu0 0.0
    %625 = vmatpush1.msra.mxu0 0.0
    %626 = vmatprep.subr.mxu0 0.0
    %627 = vmatpush1.msra.mxu0 0.0
    %628 = vmatprep.subr.mxu0 0.0
    %629 = vmatpush1.msra.mxu0 0.0
    %630 = vmatprep.subr.mxu0 0.0
    %631 = vmatpush1.msra.mxu0 0.0
    %632 = vmatprep.subr.mxu0 0.0
    %633 = vmatpush1.msra.mxu0 0.0
    %634 = vmatprep.subr.mxu0 0.0
    %635 = vmatpush1.msra.mxu0 0.0
    %636 = vmatprep.subr.mxu0 0.0
    %637 = vmatpush1.msra.mxu0 0.0
    %638 = vmatprep.subr.mxu0 0.0
    %639 = vmatpush1.msra.mxu0 0.0
    %640 = vmatprep.mubr.f32.mxu0 0.0
    %641 = vmatmul.mubr.f32.gmra.mrb[0].mxu0 %v574
    %v642 = vpop.f32.mrb[0].mxu0
    %v643 = vadd.f32 0.0, %v642
    %v644 = vpop.f32.mrb[0].mxu0
    %v645 = vadd.f32 0.0, %v644
    %646 = vdwg.mxu0
    %647 = vmatprep.subr.mxu0 0.0
    %648 = vmatpush1.msra.mxu0 %v69
    %649 = vmatprep.subr.mxu0 0.0
    %650 = vmatpush1.msra.mxu0 %v72
    %651 = vmatprep.subr.mxu0 0.0
    %652 = vmatpush1.msra.mxu0 %v75
    %653 = vmatprep.subr.mxu0 0.0
    %654 = vmatpush1.msra.mxu0 %v78
    %655 = vmatprep.subr.mxu0 0.0
    %656 = vmatpush1.msra.mxu0 %v81
    %657 = vmatprep.subr.mxu0 0.0
    %658 = vmatpush1.msra.mxu0 %v84
    %659 = vmatprep.subr.mxu0 0.0
    %660 = vmatpush1.msra.mxu0 %v87
    %661 = vmatprep.subr.mxu0 0.0
    %662 = vmatpush1.msra.mxu0 %v90
    %663 = vmatprep.subr.mxu0 0.0
    %664 = vmatpush1.msra.mxu0 0.0
    %665 = vmatprep.subr.mxu0 0.0
    %666 = vmatpush1.msra.mxu0 0.0
    %667 = vmatprep.subr.mxu0 0.0
    %668 = vmatpush1.msra.mxu0 0.0
    %669 = vmatprep.subr.mxu0 0.0
    %670 = vmatpush1.msra.mxu0 0.0
    %671 = vmatprep.subr.mxu0 0.0
    %672 = vmatpush1.msra.mxu0 0.0
    %673 = vmatprep.subr.mxu0 0.0
    %674 = vmatpush1.msra.mxu0 0.0
    %675 = vmatprep.subr.mxu0 0.0
    %676 = vmatpush1.msra.mxu0 0.0
    %677 = vmatprep.subr.mxu0 0.0
    %678 = vmatpush1.msra.mxu0 0.0
    %679 = vmatprep.subr.mxu0 0.0
    %680 = vmatpush1.msra.mxu0 0.0
    %681 = vmatprep.subr.mxu0 0.0
    %682 = vmatpush1.msra.mxu0 0.0
    %683 = vmatprep.subr.mxu0 0.0
    %684 = vmatpush1.msra.mxu0 0.0
    %685 = vmatprep.subr.mxu0 0.0
    %686 = vmatpush1.msra.mxu0 0.0
    %687 = vmatprep.subr.mxu0 0.0
    %688 = vmatpush1.msra.mxu0 0.0
    %689 = vmatprep.subr.mxu0 0.0
    %690 = vmatpush1.msra.mxu0 0.0
    %691 = vmatprep.subr.mxu0 0.0
    %692 = vmatpush1.msra.mxu0 0.0
    %693 = vmatprep.subr.mxu0 0.0
    %694 = vmatpush1.msra.mxu0 0.0
    %695 = vmatprep.subr.mxu0 0.0
    %696 = vmatpush1.msra.mxu0 0.0
    %697 = vmatprep.subr.mxu0 0.0
    %698 = vmatpush1.msra.mxu0 0.0
    %699 = vmatprep.subr.mxu0 0.0
    %700 = vmatpush1.msra.mxu0 0.0
    %701 = vmatprep.subr.mxu0 0.0
    %702 = vmatpush1.msra.mxu0 0.0
    %703 = vmatprep.subr.mxu0 0.0
    %704 = vmatpush1.msra.mxu0 0.0
    %705 = vmatprep.subr.mxu0 0.0
    %706 = vmatpush1.msra.mxu0 0.0
    %707 = vmatprep.subr.mxu0 0.0
    %708 = vmatpush1.msra.mxu0 0.0
    %709 = vmatprep.subr.mxu0 0.0
    %710 = vmatpush1.msra.mxu0 0.0
    %711 = vmatprep.mubr.f32.mxu0 0.0
    %712 = vmatmul.mubr.f32.gmra.mrb[0].mxu0 %v574
    %v713 = vpop.f32.mrb[0].mxu0
    %v714 = vadd.f32 0.0, %v713
    %v715 = vpop.f32.mrb[0].mxu0
    %716 = vdwg.mxu0
    %v720 = vcombine.low %v497, %v499
    %v722 = vunpack.c.l.s4 1966171168
    %v723 = vunpack.c.0.s8 %v722
    %v724 = vlaneseq
    %v725 = vshrl.u32 %v724, 7
    %v726 = vsub.s32 %v723, %v725
    %v727 = vrot.slane %v720, %v726
    %v729 = vunpack.c.l.s4 1966171168
    %v730 = vunpack.c.0.s8 %v729
    %v731 = vlaneseq
    %v732 = vshrl.u32 %v731, 7
    %v733 = vsub.s32 %v730, %v732
    %v734 = vrot.slane %v568, %v733
    %v735 = vcombine.low %v727, %v734
    %v737 = vunpack.c.l.s4 1966171168
    %v738 = vunpack.c.0.s8 %v737
    %v739 = vlaneseq
    %v740 = vshrl.u32 %v739, 7
    %v741 = vsub.s32 %v738, %v740
    %v742 = vrot.slane %v735, %v741
    %v744 = vmul.f32 %v18, %v742
    %v748 = vcombine.low %v643, %v645
    %v750 = vunpack.c.l.s4 1966171168
    %v751 = vunpack.c.0.s8 %v750
    %v752 = vlaneseq
    %v753 = vshrl.u32 %v752, 7
    %v754 = vsub.s32 %v751, %v753
    %v755 = vrot.slane %v748, %v754
    %v757 = vunpack.c.l.s4 1966171168
    %v758 = vunpack.c.0.s8 %v757
    %v759 = vlaneseq
    %v760 = vshrl.u32 %v759, 7
    %v761 = vsub.s32 %v758, %v760
    %v762 = vrot.slane %v714, %v761
    %v763 = vcombine.low %v755, %v762
    %v765 = vunpack.c.l.s4 1966171168
    %v766 = vunpack.c.0.s8 %v765
    %v767 = vlaneseq
    %v768 = vshrl.u32 %v767, 7
    %v769 = vsub.s32 %v766, %v768
    %v770 = vrot.slane %v763, %v769
    %v772 = vadd.f32 %v744, %v770
    %v773 = vlaneseq
    %vm774 = vcmp.ge.s32.totalorder %v773, 0
    %vm775 = vcmp.lt.s32.totalorder %v773, 384
    %vm776 = vmand %vm774, %vm775
    %777 = vst.msk [vmem:[#allocation2] sm:$0x7] %vm776, %v772
    // Predicated region
    $region18: #{tpu_custom_call.1} parent=1 // pred_check
      _
    $region19: #{tpu_custom_call.1} parent=1 // pred_check_branch
      %779 = sbr.rel (0) target = $region21
    $region20: #{tpu_custom_call.1} parent=1 // pred_region
      %s781 = ssub.s32 48, 48
      %782 = vsyncadd [#allocation3], %s781
      %s784 = sshll.u32 [#allocation2], 4
      %s785 = int_to_ptr.vmem [resolvable:$true] %s784
      %787 = dma.vmem_to_hbm [thread:$0]  %s785, 48, %s4, [#allocation3]
    $region21: #{tpu_custom_call.1} parent=1 // pred_fallthru
      _
    // Predicated region
    $region22: #{tpu_custom_call.1} parent=1 // pred_check
      _
    $region23: #{tpu_custom_call.1} parent=1 // pred_check_branch
      %789 = sbr.rel (0) target = $region25
    $region24: #{tpu_custom_call.1} parent=1 // pred_region
      %790 = dma.done [#allocation3], 48
    $region25: #{tpu_custom_call.1} parent=1 // pred_fallthru
      _
    %791 = vsyncpa [#allocation3], 1

</llo_original>
